<compile_context>
chip_gen: v5e
topology: v5e:2x2
jax: 0.10.0
libtpu: 0.0.40
codegen_flags: <defaults>
</compile_context>

<pallas_src>
import functools

import jax
import jax.numpy as jnp
from jax import lax
from jax.experimental import pallas as pl
from jax.experimental.pallas import tpu as pltpu


LN_EPS = 1e-5
_SQRT_HALF = 0.7071067811865476


def _gelu_exact(x):
    # torch.nn.GELU() default: exact erf-based GELU (kept exact for parity).
    return 0.5 * x * (1.0 + lax.erf(x * _SQRT_HALF))


def mlp_kernel(x_ref, w1_ref, b1_ref, w2_ref, b2_ref, o_ref):
    x_in = x_ref[...].astype(jnp.float32)                       # (tm, D)

    # LayerNorm (no affine), eps = 1e-5 — f32 elementwise.
    mean = jnp.mean(x_in, axis=-1, keepdims=True)
    cent = x_in - mean
    var = jnp.mean(cent * cent, axis=-1, keepdims=True)
    ln = cent * lax.rsqrt(var + LN_EPS)

    # Linear 1 + GELU.  Matmul operands in the weight dtype (bf16 fast path),
    # accumulation in f32 on the MXU.
    h = jnp.dot(ln.astype(w1_ref.dtype), w1_ref[...],
                preferred_element_type=jnp.float32)
    h = _gelu_exact(h + b1_ref[...].astype(jnp.float32))        # (tm, Dh)

    # (Dropout p=0.0 -> identity)

    # Linear 2 + GELU.
    out = jnp.dot(h.astype(w2_ref.dtype), w2_ref[...],
                  preferred_element_type=jnp.float32)
    out = _gelu_exact(out + b2_ref[...].astype(jnp.float32))    # (tm, D)

    # Residual.
    o_ref[...] = (out + x_in).astype(o_ref.dtype)


def _choose_tm(n_rows, d, dh, *, w_bytes, x_bytes, vmem_budget=40 << 20):
    """Largest MXU-friendly row tile whose working set fits the VMEM budget.

    Budget is conservative so the same choice is valid on v7x (64 MiB/TC) as
    well as v5e/v6e (128 MiB)."""
    n_aligned = max(8, ((n_rows + 7) // 8) * 8)
    # Both weight matrices, double-buffered by the pipeline (grid-invariant,
    # but the default pipeline still allocates two buffers).
    weight_bytes = 2 * 2 * d * dh * w_bytes
    tile_budget = max(vmem_budget - weight_bytes, 4 << 20)
    tm = 8
    for cand in (16, 32, 64, 128, 256, 512, 1024):
        if cand > n_aligned:
            break   # don't pad tiny inputs up to huge tiles
        per_tile = (2 * 2 * cand * d * x_bytes    # in + out tiles, double-buffered
                    + cand * dh * 4               # f32 hidden intermediate
                    + 4 * cand * d * 4)           # f32 temporaries (x_in/ln/out)
        if per_tile > tile_budget:
            break
        tm = cand
    return tm


@functools.partial(jax.jit, static_argnames=("tm", "matmul_dtype"))
def mlp_forward(x, w1, b1, w2, b2, *, tm=None, matmul_dtype=jnp.bfloat16):
    """x: (B, S, D). Weights stored as (in_dim, out_dim); biases as (1, out_dim)."""
    B, S, D = x.shape
    Dh = w1.shape[1]
    N = B * S

    w_bytes = jnp.dtype(matmul_dtype).itemsize
    x_bytes = jnp.dtype(x.dtype).itemsize
    if tm is None:
        tm = _choose_tm(N, D, Dh, w_bytes=w_bytes, x_bytes=x_bytes)

    # Pad the token dimension to a multiple of the row tile (no divisibility
    # assert); padded rows compute garbage that is sliced off afterwards.
    n_pad = pl.cdiv(N, tm) * tm
    x2 = x.reshape(N, D)
    if n_pad != N:
        x2 = jnp.pad(x2, ((0, n_pad - N), (0, 0)))

    # Matmul operands in bf16 (halves weight HBM traffic + VMEM residency,
    # ~2x MXU rate); biases stay f32 for the elementwise path.
    w1c = w1.astype(matmul_dtype)
    w2c = w2.astype(matmul_dtype)
    b1c = b1.astype(jnp.float32)
    b2c = b2.astype(jnp.float32)

    cost = pl.CostEstimate(
        flops=4 * n_pad * D * Dh + 2 * n_pad * (Dh + D),
        transcendentals=n_pad * (Dh + D),
        bytes_accessed=(2 * N * D * x_bytes
                        + 2 * D * Dh * w_bytes
                        + (Dh + D) * 4),
    )

    # Explicit VMEM budget: working set (weights double-buffered + tiles +
    # f32 intermediates) with 2x headroom, clamped so it is legal on v7x's
    # 64 MiB VMEM as well as v5e/v6e.
    est = (2 * 2 * D * Dh * w_bytes
           + 2 * 2 * tm * D * x_bytes
           + tm * Dh * 4 + 4 * tm * D * 4
           + 2 * (Dh + D) * 4)
    vmem_limit = int(min(max(2 * est, 32 << 20), 64 << 20))

    # TODO(synk): when D*Dh is large enough that both weights + the (tm, Dh)
    # hidden overflow 64 MiB even at bf16, add a second grid axis over Dh with
    # a pl.when-initialized f32 accumulator (and single-buffer the weights).

    out = pl.pallas_call(
        mlp_kernel,
        out_shape=jax.ShapeDtypeStruct((n_pad, D), x.dtype),
        grid_spec=pltpu.PrefetchScalarGridSpec(
            num_scalar_prefetch=0,
            grid=(n_pad // tm,),
            in_specs=[
                pl.BlockSpec((tm, D), lambda i: (i, 0)),   # x rows (pipelined)
                # Weights / biases: constant index_map -> fetched once, stay
                # resident in VMEM across the whole row grid.
                pl.BlockSpec((D, Dh), lambda i: (0, 0)),   # W1
                pl.BlockSpec((1, Dh), lambda i: (0, 0)),   # b1
                pl.BlockSpec((Dh, D), lambda i: (0, 0)),   # W2
                pl.BlockSpec((1, D), lambda i: (0, 0)),    # b2
            ],
            out_specs=pl.BlockSpec((tm, D), lambda i: (i, 0)),
        ),
        compiler_params=pltpu.CompilerParams(
            dimension_semantics=("parallel",),   # megacore / both TCs on v7x
            vmem_limit_bytes=vmem_limit,
        ),
        cost_estimate=cost,
    )(x2, w1c, b1c, w2c, b2c)

    if n_pad != N:
        out = out[:N]
    return out.reshape(B, S, D)


def init_params(key, dim_embed, dim_internal_factor=2):
    """Deterministic init mimicking torch.nn.Linear default (U(-1/sqrt(fan_in), ...))."""
    dim_internal = int(dim_embed * dim_internal_factor)
    k1, k2, k3, k4 = jax.random.split(key, 4)

    bound1 = 1.0 / jnp.sqrt(dim_embed)
    w1 = jax.random.uniform(k1, (dim_embed, dim_internal),
                            minval=-bound1, maxval=bound1, dtype=jnp.float32)
    b1 = jax.random.uniform(k2, (1, dim_internal),
                            minval=-bound1, maxval=bound1, dtype=jnp.float32)

    bound2 = 1.0 / jnp.sqrt(dim_internal)
    w2 = jax.random.uniform(k3, (dim_internal, dim_embed),
                            minval=-bound2, maxval=bound2, dtype=jnp.float32)
    b2 = jax.random.uniform(k4, (1, dim_embed),
                            minval=-bound2, maxval=bound2, dtype=jnp.float32)
    return w1, b1, w2, b2


def mlp_reference(x, w1, b1, w2, b2):
    """Pure-JAX f32 reference of the same forward, for a sanity check."""
    x_in = x
    mean = jnp.mean(x, axis=-1, keepdims=True)
    var = jnp.mean((x - mean) ** 2, axis=-1, keepdims=True)
    h = (x - mean) * lax.rsqrt(var + LN_EPS)
    h = _gelu_exact(h @ w1 + b1)
    h = _gelu_exact(h @ w2 + b2)
    return h + x_in


if __name__ == "__main__":
    key = jax.random.PRNGKey(0)
    kx, kp = jax.random.split(key)

    B, S, D = 2, 8, 128          # batch, sequence, dim_embed (lane-aligned)
    x = jax.random.normal(kx, (B, S, D), dtype=jnp.float32)
    w1, b1, w2, b2 = init_params(kp, D, dim_internal_factor=2)

    ref = mlp_reference(x, w1, b1, w2, b2)

    # Fast path: bf16 matmul operands, f32 accumulation + f32 elementwise.
    out = jax.block_until_ready(mlp_forward(x, w1, b1, w2, b2))
    assert out.shape == (B, S, D)
    assert jnp.allclose(out, ref, atol=2e-2, rtol=2e-2), "bf16 path mismatch vs reference"

    # Exact path: f32 matmuls, tight tolerance against the pure-JAX reference.
    out_f32 = jax.block_until_ready(
        mlp_forward(x, w1, b1, w2, b2, matmul_dtype=jnp.float32))
    assert jnp.allclose(out_f32, ref, atol=1e-5, rtol=1e-5), "f32 path mismatch vs reference"

    print("KERNEL_OK")
</pallas_src>

<mosaic_0001>
module attributes {stable_mosaic.version = 11 : i64} {
  func.func @mlp_kernel(%arg0: i32, %arg1: memref<16x128xf32, #tpu.memory_space<vmem>>, %arg2: memref<128x256xbf16, #tpu.memory_space<vmem>>, %arg3: memref<1x256xf32, #tpu.memory_space<vmem>>, %arg4: memref<256x128xbf16, #tpu.memory_space<vmem>>, %arg5: memref<1x128xf32, #tpu.memory_space<vmem>>, %arg6: memref<16x128xf32, #tpu.memory_space<vmem>>) attributes {dimension_semantics = [#tpu.dimension_semantics<parallel>], iteration_bounds = array<i64: 1>, scalar_prefetch = 0 : i64, scratch_operands = 0 : i64, tpu.core_type = #tpu.core_type<tc>, window_params = [{transform_indices = @transform_0, window_bounds = array<i64: 16, 128>}, {pipeline_mode = #tpu.pipeline_mode<synchronous>, transform_indices = @transform_1, window_bounds = array<i64: 128, 256>}, {pipeline_mode = #tpu.pipeline_mode<synchronous>, transform_indices = @transform_2, window_bounds = array<i64: 1, 256>}, {pipeline_mode = #tpu.pipeline_mode<synchronous>, transform_indices = @transform_3, window_bounds = array<i64: 256, 128>}, {pipeline_mode = #tpu.pipeline_mode<synchronous>, transform_indices = @transform_4, window_bounds = array<i64: 1, 128>}, {transform_indices = @transform_5, window_bounds = array<i64: 16, 128>}]} {
    %c0 = arith.constant 0 : index
    %c0_0 = arith.constant 0 : index
    %0 = vector.load %arg1[%c0, %c0_0] : memref<16x128xf32, #tpu.memory_space<vmem>>, vector<16x128xf32>
    %cst = arith.constant dense<0.000000e+00> : vector<16xf32>
    %1 = vector.multi_reduction <add>, %0, %cst [1] : vector<16x128xf32> to vector<16xf32>
    %2 = vector.shape_cast %1 : vector<16xf32> to vector<16x1xf32>
    %cst_1 = arith.constant 1.280000e+02 : f32
    %3 = vector.broadcast %cst_1 : f32 to vector<16x1xf32>
    %4 = arith.divf %2, %3 : vector<16x1xf32>
    %5 = vector.broadcast %4 : vector<16x1xf32> to vector<16x128xf32>
    %6 = arith.subf %0, %5 : vector<16x128xf32>
    %7 = arith.mulf %6, %6 : vector<16x128xf32>
    %cst_2 = arith.constant dense<0.000000e+00> : vector<16xf32>
    %8 = vector.multi_reduction <add>, %7, %cst_2 [1] : vector<16x128xf32> to vector<16xf32>
    %9 = vector.shape_cast %8 : vector<16xf32> to vector<16x1xf32>
    %cst_3 = arith.constant 1.280000e+02 : f32
    %10 = vector.broadcast %cst_3 : f32 to vector<16x1xf32>
    %11 = arith.divf %9, %10 : vector<16x1xf32>
    %cst_4 = arith.constant 9.99999974E-6 : f32
    %12 = vector.broadcast %cst_4 : f32 to vector<16x1xf32>
    %13 = arith.addf %11, %12 : vector<16x1xf32>
    %14 = math.rsqrt %13 : vector<16x1xf32>
    %15 = vector.broadcast %14 : vector<16x1xf32> to vector<16x128xf32>
    %16 = arith.mulf %6, %15 : vector<16x128xf32>
    %17 = arith.truncf %16 : vector<16x128xf32> to vector<16x128xbf16>
    %c0_5 = arith.constant 0 : index
    %c0_6 = arith.constant 0 : index
    %18 = vector.load %arg2[%c0_5, %c0_6] : memref<128x256xbf16, #tpu.memory_space<vmem>>, vector<128x256xbf16>
    %cst_7 = arith.constant dense<0.000000e+00> : vector<16x256xf32>
    %19 = tpu.matmul %17, %18, %cst_7 {dimension_numbers = #tpu.dot_dimension_numbers<[1], [0], [0], [1], [0, 0, 1, 1], [], []>} : vector<16x128xbf16>, vector<128x256xbf16>, vector<16x256xf32> -> vector<16x256xf32>
    %c0_8 = arith.constant 0 : index
    %c0_9 = arith.constant 0 : index
    %20 = vector.load %arg3[%c0_8, %c0_9] : memref<1x256xf32, #tpu.memory_space<vmem>>, vector<1x256xf32>
    %21 = vector.broadcast %20 : vector<1x256xf32> to vector<16x256xf32>
    %22 = arith.addf %19, %21 : vector<16x256xf32>
    %cst_10 = arith.constant 5.000000e-01 : f32
    %23 = vector.broadcast %cst_10 : f32 to vector<16x256xf32>
    %24 = arith.mulf %23, %22 : vector<16x256xf32>
    %cst_11 = arith.constant 0.707106769 : f32
    %25 = vector.broadcast %cst_11 : f32 to vector<16x256xf32>
    %26 = arith.mulf %22, %25 : vector<16x256xf32>
    %27 = math.erf %26 : vector<16x256xf32>
    %cst_12 = arith.constant 1.000000e+00 : f32
    %28 = vector.broadcast %cst_12 : f32 to vector<16x256xf32>
    %29 = arith.addf %28, %27 : vector<16x256xf32>
    %30 = arith.mulf %24, %29 : vector<16x256xf32>
    %31 = arith.truncf %30 : vector<16x256xf32> to vector<16x256xbf16>
    %c0_13 = arith.constant 0 : index
    %c0_14 = arith.constant 0 : index
    %32 = vector.load %arg4[%c0_13, %c0_14] : memref<256x128xbf16, #tpu.memory_space<vmem>>, vector<256x128xbf16>
    %cst_15 = arith.constant dense<0.000000e+00> : vector<16x128xf32>
    %33 = tpu.matmul %31, %32, %cst_15 {dimension_numbers = #tpu.dot_dimension_numbers<[1], [0], [0], [1], [0, 0, 1, 1], [], []>} : vector<16x256xbf16>, vector<256x128xbf16>, vector<16x128xf32> -> vector<16x128xf32>
    %c0_16 = arith.constant 0 : index
    %c0_17 = arith.constant 0 : index
    %34 = vector.load %arg5[%c0_16, %c0_17] : memref<1x128xf32, #tpu.memory_space<vmem>>, vector<1x128xf32>
    %35 = vector.broadcast %34 : vector<1x128xf32> to vector<16x128xf32>
    %36 = arith.addf %33, %35 : vector<16x128xf32>
    %cst_18 = arith.constant 5.000000e-01 : f32
    %37 = vector.broadcast %cst_18 : f32 to vector<16x128xf32>
    %38 = arith.mulf %37, %36 : vector<16x128xf32>
    %cst_19 = arith.constant 0.707106769 : f32
    %39 = vector.broadcast %cst_19 : f32 to vector<16x128xf32>
    %40 = arith.mulf %36, %39 : vector<16x128xf32>
    %41 = math.erf %40 : vector<16x128xf32>
    %cst_20 = arith.constant 1.000000e+00 : f32
    %42 = vector.broadcast %cst_20 : f32 to vector<16x128xf32>
    %43 = arith.addf %42, %41 : vector<16x128xf32>
    %44 = arith.mulf %38, %43 : vector<16x128xf32>
    %45 = arith.addf %44, %0 : vector<16x128xf32>
    %c0_21 = arith.constant 0 : index
    %c0_22 = arith.constant 0 : index
    %46 = vector.load %arg6[%c0_21, %c0_22] : memref<16x128xf32, #tpu.memory_space<vmem>>, vector<16x128xf32>
    tpu.vector_store %arg6[%c0_21, %c0_22], %45 {strides = array<i32>} : memref<16x128xf32, #tpu.memory_space<vmem>>, vector<16x128xf32>,
    return
  }
  func.func @transform_0(%arg0: i32) -> (i32, i32) {
    %c0_i32 = arith.constant 0 : i32
    %c0_i32_0 = arith.constant 0 : i32
    return %arg0, %c0_i32 : i32, i32
  }
  func.func @transform_1(%arg0: i32) -> (i32, i32) {
    %c0_i32 = arith.constant 0 : i32
    %c0_i32_0 = arith.constant 0 : i32
    %c0_i32_1 = arith.constant 0 : i32
    return %c0_i32, %c0_i32_0 : i32, i32
  }
  func.func @transform_2(%arg0: i32) -> (i32, i32) {
    %c0_i32 = arith.constant 0 : i32
    %c0_i32_0 = arith.constant 0 : i32
    %c0_i32_1 = arith.constant 0 : i32
    return %c0_i32, %c0_i32_0 : i32, i32
  }
  func.func @transform_3(%arg0: i32) -> (i32, i32) {
    %c0_i32 = arith.constant 0 : i32
    %c0_i32_0 = arith.constant 0 : i32
    %c0_i32_1 = arith.constant 0 : i32
    return %c0_i32, %c0_i32_0 : i32, i32
  }
  func.func @transform_4(%arg0: i32) -> (i32, i32) {
    %c0_i32 = arith.constant 0 : i32
    %c0_i32_0 = arith.constant 0 : i32
    %c0_i32_1 = arith.constant 0 : i32
    return %c0_i32, %c0_i32_0 : i32, i32
  }
  func.func @transform_5(%arg0: i32) -> (i32, i32) {
    %c0_i32 = arith.constant 0 : i32
    %c0_i32_0 = arith.constant 0 : i32
    return %arg0, %c0_i32 : i32, i32
  }
}

</mosaic_0001>

<llo_original>
// kernel: mlp_forward.1
$region0: #{mlp_forward.1}
  #allocation0 [shape = 'u32[]', space=smem, size = 0x4, offset = 0x4, fixed_abs, tag = 'smem constant byte address 0x4 - core index']
  #allocation1 [shape = 'u32[72,128]{1,0:T(1,128)}', space=vmem, size = 0x9000, scoped, tag = 'internal scratch']
  %s0 = inlined_call_operand.vmem [shape: f32[16,128], index: 0, kind: input, shape index: {}]
  %s1 = inlined_call_operand.vmem [shape: bf16[128,256], index: 1, kind: input, shape index: {}]
  %s2 = inlined_call_operand.vmem [shape: f32[1,256], index: 2, kind: input, shape index: {}]
  %s3 = inlined_call_operand.vmem [shape: bf16[256,128], index: 3, kind: input, shape index: {}]
  %s4 = inlined_call_operand.vmem [shape: f32[1,128], index: 4, kind: input, shape index: {}]
  %s5 = inlined_call_operand.hbm [shape: f32[16,128], index: 5, kind: output, shape index: {}]
  %s6 = sld [smem:[#allocation0]]
  $region30: #{mlp_forward.1} parent=0
    _
  %s8 = ssub.s32 1, %s6
  %s9 = scalar_select 0, %s8, %s6
  $region1: #{mlp_forward.1} parent=0
    #allocation2 [shape = 'u8[8192]{0}', space=vmem, size = 0x2000, scoped, tag = 'output window, operand 0, single buffered']
    #allocation3 [shape = 's32[1]{0}', space=sflag, size = 0x4, scoped, tag = 'scoped memory for mlp_forward.1']
    %10 = vsyncpa [#allocation3], 0
    // Predicated region
    $region2: #{mlp_forward.1} parent=1 // pred_check
      _
    $region3: #{mlp_forward.1} parent=1 // pred_check_branch
      %12 = sbr.rel (0) target = $region5
    $region4: #{mlp_forward.1} parent=1 // pred_region
      _
    $region5: #{mlp_forward.1} parent=1 // pred_fallthru
      _
    // Predicated region
    $region6: #{mlp_forward.1} parent=1 // pred_check
      _
    $region7: #{mlp_forward.1} parent=1 // pred_check_branch
      %14 = sbr.rel (0) target = $region9
    $region8: #{mlp_forward.1} parent=1 // pred_region
      _
    $region9: #{mlp_forward.1} parent=1 // pred_fallthru
      _
    // Predicated region
    $region10: #{mlp_forward.1} parent=1 // pred_check
      _
    $region11: #{mlp_forward.1} parent=1 // pred_check_branch
      %16 = sbr.rel (0) target = $region13
    $region12: #{mlp_forward.1} parent=1 // pred_region
      _
    $region13: #{mlp_forward.1} parent=1 // pred_fallthru
      _
    // Predicated region
    $region14: #{mlp_forward.1} parent=1 // pred_check
      _
    $region15: #{mlp_forward.1} parent=1 // pred_check_branch
      %18 = sbr.rel (0) target = $region17
    $region16: #{mlp_forward.1} parent=1 // pred_region
      _
    $region17: #{mlp_forward.1} parent=1 // pred_fallthru
      _
    // Predicated region
    $region18: #{mlp_forward.1} parent=1 // pred_check
      _
    $region19: #{mlp_forward.1} parent=1 // pred_check_branch
      %20 = sbr.rel (0) target = $region21
    $region20: #{mlp_forward.1} parent=1 // pred_region
      _
    $region21: #{mlp_forward.1} parent=1 // pred_fallthru
      _
    %v21 = vld [vmem:[%s0] sm:$0xff]
    %v22 = vld [vmem:[%s0 + $0x8] sm:$0xff]
    %23 = vadd.xlane.f32.xlu0 %v21
    %v24 = vpop.xlane.xlu0 %23
    %25 = vadd.xlane.f32.xlu0 %v22
    %v26 = vpop.xlane.xlu0 %25
    %v27 = vrcp.pop 128.0
    %v28 = vmul.f32 128.0, %v27
    %v29 = vsub.f32 1.0, %v28
    %v30 = vmul.f32 %v27, %v29
    %v31 = vadd.f32 %v27, %v30
    %vm32 = vweird.f32 %v27
    %v33 = vsel %vm32, %v27, %v31
    %v34 = vmul.f32 %v24, %v33
    %v35 = vmul.f32 %v26, %v33
    %v36 = vsub.f32 %v21, %v34
    %v37 = vsub.f32 %v22, %v35
    %v38 = vmul.f32 %v36, %v36
    %v39 = vmul.f32 %v37, %v37
    %40 = vadd.xlane.f32.xlu0 %v38
    %v41 = vpop.xlane.xlu0 %40
    %42 = vadd.xlane.f32.xlu0 %v39
    %v43 = vpop.xlane.xlu0 %42
    %v44 = vmul.f32 %v41, %v33
    %v45 = vmul.f32 %v43, %v33
    %v46 = vadd.f32 %v44, 1e-05
    %v47 = vadd.f32 %v45, 1e-05
    %v48 = vrsqrt.pop %v46
    %v49 = vmul.f32 %v48, %v46
    %v50 = vmul.f32 %v49, %v48
    %v51 = vmul.f32 0.5, %v50
    %v52 = vsub.f32 1.5, %v51
    %v53 = vmul.f32 %v48, %v52
    %vm54 = vweird.f32 %v46
    %vm55 = vweird.f32 %v48
    %vm56 = vmor %vm54, %vm55
    %v57 = vsel %vm56, %v48, %v53
    %v58 = vrsqrt.pop %v47
    %v59 = vmul.f32 %v58, %v47
    %v60 = vmul.f32 %v59, %v58
    %v61 = vmul.f32 0.5, %v60
    %v62 = vsub.f32 1.5, %v61
    %v63 = vmul.f32 %v58, %v62
    %vm64 = vweird.f32 %v47
    %vm65 = vweird.f32 %v58
    %vm66 = vmor %vm64, %vm65
    %v67 = vsel %vm66, %v58, %v63
    %v68 = vmul.f32 %v36, %v57
    %v69 = vmul.f32 %v37, %v67
    %v70 = vpack.c.bf16 %v69, %v68
    %v71 = vld [vmem:[%s1] sm:$0xff]
    %v72 = vld [vmem:[%s1 + $0x8] sm:$0xff]
    %v73 = vld [vmem:[%s1 + $0x10] sm:$0xff]
    %v74 = vld [vmem:[%s1 + $0x18] sm:$0xff]
    %v75 = vld [vmem:[%s1 + $0x20] sm:$0xff]
    %v76 = vld [vmem:[%s1 + $0x28] sm:$0xff]
    %v77 = vld [vmem:[%s1 + $0x30] sm:$0xff]
    %v78 = vld [vmem:[%s1 + $0x38] sm:$0xff]
    %v79 = vld [vmem:[%s1 + $0x40] sm:$0xff]
    %v80 = vld [vmem:[%s1 + $0x48] sm:$0xff]
    %v81 = vld [vmem:[%s1 + $0x50] sm:$0xff]
    %v82 = vld [vmem:[%s1 + $0x58] sm:$0xff]
    %v83 = vld [vmem:[%s1 + $0x60] sm:$0xff]
    %v84 = vld [vmem:[%s1 + $0x68] sm:$0xff]
    %v85 = vld [vmem:[%s1 + $0x70] sm:$0xff]
    %v86 = vld [vmem:[%s1 + $0x78] sm:$0xff]
    %v87 = vld [vmem:[%s2] sm:$0x3]
    %v89 = vperm.slane %v87, 0
    %v90 = vperm.slane %v87, 1
    %v109 = vunpack.c.l.b16 %v71
    %v110 = vunpack.c.h.b16 %v71
    %v111 = vunpack.c.l.b16 %v72
    %v112 = vunpack.c.h.b16 %v72
    %v113 = vunpack.c.l.b16 %v73
    %v114 = vunpack.c.h.b16 %v73
    %v115 = vunpack.c.l.b16 %v74
    %v116 = vunpack.c.h.b16 %v74
    %v117 = vunpack.c.l.b16 %v75
    %v118 = vunpack.c.h.b16 %v75
    %v119 = vunpack.c.l.b16 %v76
    %v120 = vunpack.c.h.b16 %v76
    %v121 = vunpack.c.l.b16 %v77
    %v122 = vunpack.c.h.b16 %v77
    %v123 = vunpack.c.l.b16 %v78
    %v124 = vunpack.c.h.b16 %v78
    %v125 = vunpack.c.l.b16 %v79
    %v126 = vunpack.c.h.b16 %v79
    %v127 = vunpack.c.l.b16 %v80
    %v128 = vunpack.c.h.b16 %v80
    %v129 = vunpack.c.l.b16 %v81
    %v130 = vunpack.c.h.b16 %v81
    %v131 = vunpack.c.l.b16 %v82
    %v132 = vunpack.c.h.b16 %v82
    %v133 = vunpack.c.l.b16 %v83
    %v134 = vunpack.c.h.b16 %v83
    %v135 = vunpack.c.l.b16 %v84
    %v136 = vunpack.c.h.b16 %v84
    %v137 = vunpack.c.l.b16 %v85
    %v138 = vunpack.c.h.b16 %v85
    %v139 = vunpack.c.l.b16 %v86
    %v140 = vunpack.c.h.b16 %v86
    %v141 = vpack.c.b16 %v111, %v109
    %v142 = vpack.c.b16 %v112, %v110
    %v143 = vpack.c.b16 %v115, %v113
    %v144 = vpack.c.b16 %v116, %v114
    %v145 = vpack.c.b16 %v119, %v117
    %v146 = vpack.c.b16 %v120, %v118
    %v147 = vpack.c.b16 %v123, %v121
    %v148 = vpack.c.b16 %v124, %v122
    %v149 = vpack.c.b16 %v127, %v125
    %v150 = vpack.c.b16 %v128, %v126
    %v151 = vpack.c.b16 %v131, %v129
    %v152 = vpack.c.b16 %v132, %v130
    %v153 = vpack.c.b16 %v135, %v133
    %v154 = vpack.c.b16 %v136, %v134
    %v155 = vpack.c.b16 %v139, %v137
    %v156 = vpack.c.b16 %v140, %v138
    %173 = vmatpush.bf16.msra.mxu0 %v155
    %174 = vmatpush.bf16.msra.mxu0 %v153
    %175 = vmatpush.bf16.msra.mxu0 %v151
    %176 = vmatpush.bf16.msra.mxu0 %v149
    %177 = vmatpush.bf16.msra.mxu0 %v147
    %178 = vmatpush.bf16.msra.mxu0 %v145
    %179 = vmatpush.bf16.msra.mxu0 %v143
    %180 = vmatpush.bf16.msra.mxu0 %v141
    %181 = vmatmul.bf16.gmra.mxu0 %v70
    %v182 = vpop.f32.mrf.mxu0
    %v183 = vadd.f32 %v89, %v182
    %v184 = vpop.f32.mrf.mxu0
    %v185 = vadd.f32 %v89, %v184
    %186 = vdwg.mxu0
    %187 = vmatpush.bf16.msra.mxu0 %v156
    %188 = vmatpush.bf16.msra.mxu0 %v154
    %189 = vmatpush.bf16.msra.mxu0 %v152
    %190 = vmatpush.bf16.msra.mxu0 %v150
    %191 = vmatpush.bf16.msra.mxu0 %v148
    %192 = vmatpush.bf16.msra.mxu0 %v146
    %193 = vmatpush.bf16.msra.mxu0 %v144
    %194 = vmatpush.bf16.msra.mxu0 %v142
    %195 = vmatmul.bf16.gmra.mxu0 %v70
    %v196 = vpop.f32.mrf.mxu0
    %v197 = vadd.f32 %v90, %v196
    %v198 = vpop.f32.mrf.mxu0
    %v199 = vadd.f32 %v90, %v198
    %200 = vdwg.mxu0
    %v201 = vmul.f32 %v183, 0.5
    %v202 = vmul.f32 %v197, 0.5
    %v203 = vmul.f32 %v185, 0.5
    %v204 = vmul.f32 %v199, 0.5
    %v205 = vmul.f32 %v183, 0.70710677
    %v206 = vmul.f32 %v197, 0.70710677
    %v207 = vmul.f32 %v185, 0.70710677
    %v208 = vmul.f32 %v199, 0.70710677
    %v209 = vmul.f32 %v205, %v205
    %v210 = vmin.f32 16.0, %v209
    %v211 = vmul.f32 %v210, 2.1237322e-06
    %v212 = vadd.f32 %v211, 0.00028619796
    %v213 = vmul.f32 %v210, %v212
    %v214 = vadd.f32 %v213, 0.0036580483
    %v215 = vmul.f32 %v210, %v214
    %v216 = vadd.f32 %v215, 0.05243302
    %v217 = vmul.f32 %v210, %v216
    %v218 = vadd.f32 %v217, 0.18741608
    %v219 = vmul.f32 %v210, %v218
    %v220 = vadd.f32 %v219, 1.1283791
    %v221 = vmul.f32 %v205, %v220
    %v222 = vmul.f32 %v210, 3.8918573e-05
    %v223 = vadd.f32 %v222, 0.001143296
    %v224 = vmul.f32 %v210, %v223
    %v225 = vadd.f32 %v224, 0.014752088
    %v226 = vmul.f32 %v210, %v225
    %v227 = vadd.f32 %v226, 0.112945676
    %v228 = vmul.f32 %v210, %v227
    %v229 = vadd.f32 %v228, 0.4994258
    %v230 = vmul.f32 %v210, %v229
    %v231 = vadd.f32 %v230, 1.0
    %v232 = vrcp.pop %v231
    %v233 = vmul.f32 %v231, %v232
    %v234 = vsub.f32 1.0, %v233
    %v235 = vmul.f32 %v232, %v234
    %v236 = vadd.f32 %v232, %v235
    %vm237 = vweird.f32 %v231
    %vm238 = vweird.f32 %v232
    %vm239 = vmor %vm237, %vm238
    %v240 = vsel %vm239, %v232, %v236
    %v241 = vand.u32 2147483647, %v231
    %vm242 = vcmp.eq.f32.partialorder %v241, 8.507059e+37
    %v243 = vand.u32 %v231, 2147483648
    %v244 = vor.u32 1.1754944e-38, %v243
    %v245 = vsel %vm242, %v244, %v240
    %v246 = vmul.f32 %v221, %v245
    %v247 = vmin.f32 %v246, 1.0
    %v248 = vmax.f32 %v247, -1.0
    %v249 = vmul.f32 %v206, %v206
    %v250 = vmin.f32 16.0, %v249
    %v251 = vmul.f32 %v250, 2.1237322e-06
    %v252 = vadd.f32 %v251, 0.00028619796
    %v253 = vmul.f32 %v250, %v252
    %v254 = vadd.f32 %v253, 0.0036580483
    %v255 = vmul.f32 %v250, %v254
    %v256 = vadd.f32 %v255, 0.05243302
    %v257 = vmul.f32 %v250, %v256
    %v258 = vadd.f32 %v257, 0.18741608
    %v259 = vmul.f32 %v250, %v258
    %v260 = vadd.f32 %v259, 1.1283791
    %v261 = vmul.f32 %v206, %v260
    %v262 = vmul.f32 %v250, 3.8918573e-05
    %v263 = vadd.f32 %v262, 0.001143296
    %v264 = vmul.f32 %v250, %v263
    %v265 = vadd.f32 %v264, 0.014752088
    %v266 = vmul.f32 %v250, %v265
    %v267 = vadd.f32 %v266, 0.112945676
    %v268 = vmul.f32 %v250, %v267
    %v269 = vadd.f32 %v268, 0.4994258
    %v270 = vmul.f32 %v250, %v269
    %v271 = vadd.f32 %v270, 1.0
    %v272 = vrcp.pop %v271
    %v273 = vmul.f32 %v271, %v272
    %v274 = vsub.f32 1.0, %v273
    %v275 = vmul.f32 %v272, %v274
    %v276 = vadd.f32 %v272, %v275
    %vm277 = vweird.f32 %v271
    %vm278 = vweird.f32 %v272
    %vm279 = vmor %vm277, %vm278
    %v280 = vsel %vm279, %v272, %v276
    %v281 = vand.u32 2147483647, %v271
    %vm282 = vcmp.eq.f32.partialorder %v281, 8.507059e+37
    %v283 = vand.u32 %v271, 2147483648
    %v284 = vor.u32 1.1754944e-38, %v283
    %v285 = vsel %vm282, %v284, %v280
    %v286 = vmul.f32 %v261, %v285
    %v287 = vmin.f32 %v286, 1.0
    %v288 = vmax.f32 %v287, -1.0
    %v289 = vmul.f32 %v207, %v207
    %v290 = vmin.f32 16.0, %v289
    %v291 = vmul.f32 %v290, 2.1237322e-06
    %v292 = vadd.f32 %v291, 0.00028619796
    %v293 = vmul.f32 %v290, %v292
    %v294 = vadd.f32 %v293, 0.0036580483
    %v295 = vmul.f32 %v290, %v294
    %v296 = vadd.f32 %v295, 0.05243302
    %v297 = vmul.f32 %v290, %v296
    %v298 = vadd.f32 %v297, 0.18741608
    %v299 = vmul.f32 %v290, %v298
    %v300 = vadd.f32 %v299, 1.1283791
    %v301 = vmul.f32 %v207, %v300
    %v302 = vmul.f32 %v290, 3.8918573e-05
    %v303 = vadd.f32 %v302, 0.001143296
    %v304 = vmul.f32 %v290, %v303
    %v305 = vadd.f32 %v304, 0.014752088
    %v306 = vmul.f32 %v290, %v305
    %v307 = vadd.f32 %v306, 0.112945676
    %v308 = vmul.f32 %v290, %v307
    %v309 = vadd.f32 %v308, 0.4994258
    %v310 = vmul.f32 %v290, %v309
    %v311 = vadd.f32 %v310, 1.0
    %v312 = vrcp.pop %v311
    %v313 = vmul.f32 %v311, %v312
    %v314 = vsub.f32 1.0, %v313
    %v315 = vmul.f32 %v312, %v314
    %v316 = vadd.f32 %v312, %v315
    %vm317 = vweird.f32 %v311
    %vm318 = vweird.f32 %v312
    %vm319 = vmor %vm317, %vm318
    %v320 = vsel %vm319, %v312, %v316
    %v321 = vand.u32 2147483647, %v311
    %vm322 = vcmp.eq.f32.partialorder %v321, 8.507059e+37
    %v323 = vand.u32 %v311, 2147483648
    %v324 = vor.u32 1.1754944e-38, %v323
    %v325 = vsel %vm322, %v324, %v320
    %v326 = vmul.f32 %v301, %v325
    %v327 = vmin.f32 %v326, 1.0
    %v328 = vmax.f32 %v327, -1.0
    %v329 = vmul.f32 %v208, %v208
    %v330 = vmin.f32 16.0, %v329
    %v331 = vmul.f32 %v330, 2.1237322e-06
    %v332 = vadd.f32 %v331, 0.00028619796
    %v333 = vmul.f32 %v330, %v332
    %v334 = vadd.f32 %v333, 0.0036580483
    %v335 = vmul.f32 %v330, %v334
    %v336 = vadd.f32 %v335, 0.05243302
    %v337 = vmul.f32 %v330, %v336
    %v338 = vadd.f32 %v337, 0.18741608
    %v339 = vmul.f32 %v330, %v338
    %v340 = vadd.f32 %v339, 1.1283791
    %v341 = vmul.f32 %v208, %v340
    %v342 = vmul.f32 %v330, 3.8918573e-05
    %v343 = vadd.f32 %v342, 0.001143296
    %v344 = vmul.f32 %v330, %v343
    %v345 = vadd.f32 %v344, 0.014752088
    %v346 = vmul.f32 %v330, %v345
    %v347 = vadd.f32 %v346, 0.112945676
    %v348 = vmul.f32 %v330, %v347
    %v349 = vadd.f32 %v348, 0.4994258
    %v350 = vmul.f32 %v330, %v349
    %v351 = vadd.f32 %v350, 1.0
    %v352 = vrcp.pop %v351
    %v353 = vmul.f32 %v351, %v352
    %v354 = vsub.f32 1.0, %v353
    %v355 = vmul.f32 %v352, %v354
    %v356 = vadd.f32 %v352, %v355
    %vm357 = vweird.f32 %v351
    %vm358 = vweird.f32 %v352
    %vm359 = vmor %vm357, %vm358
    %v360 = vsel %vm359, %v352, %v356
    %v361 = vand.u32 2147483647, %v351
    %vm362 = vcmp.eq.f32.partialorder %v361, 8.507059e+37
    %v363 = vand.u32 %v351, 2147483648
    %v364 = vor.u32 1.1754944e-38, %v363
    %v365 = vsel %vm362, %v364, %v360
    %v366 = vmul.f32 %v341, %v365
    %v367 = vmin.f32 %v366, 1.0
    %v368 = vmax.f32 %v367, -1.0
    %v369 = vadd.f32 %v248, 1.0
    %v370 = vadd.f32 %v288, 1.0
    %v371 = vadd.f32 %v328, 1.0
    %v372 = vadd.f32 %v368, 1.0
    %v373 = vmul.f32 %v201, %v369
    %v374 = vmul.f32 %v202, %v370
    %v375 = vmul.f32 %v203, %v371
    %v376 = vmul.f32 %v204, %v372
    %v377 = vpack.c.bf16 %v375, %v373
    %v378 = vpack.c.bf16 %v376, %v374
    %v379 = vld [vmem:[%s3] sm:$0xf]
    %v380 = vld [vmem:[%s3 + $0x4] sm:$0xf]
    %v381 = vld [vmem:[%s3 + $0x8] sm:$0xf]
    %v382 = vld [vmem:[%s3 + $0xc] sm:$0xf]
    %v383 = vld [vmem:[%s3 + $0x10] sm:$0xf]
    %v384 = vld [vmem:[%s3 + $0x14] sm:$0xf]
    %v385 = vld [vmem:[%s3 + $0x18] sm:$0xf]
    %v386 = vld [vmem:[%s3 + $0x1c] sm:$0xf]
    %v387 = vld [vmem:[%s3 + $0x20] sm:$0xf]
    %v388 = vld [vmem:[%s3 + $0x24] sm:$0xf]
    %v389 = vld [vmem:[%s3 + $0x28] sm:$0xf]
    %v390 = vld [vmem:[%s3 + $0x2c] sm:$0xf]
    %v391 = vld [vmem:[%s3 + $0x30] sm:$0xf]
    %v392 = vld [vmem:[%s3 + $0x34] sm:$0xf]
    %v393 = vld [vmem:[%s3 + $0x38] sm:$0xf]
    %v394 = vld [vmem:[%s3 + $0x3c] sm:$0xf]
    %v395 = vld [vmem:[%s3 + $0x40] sm:$0xf]
    %v396 = vld [vmem:[%s3 + $0x44] sm:$0xf]
    %v397 = vld [vmem:[%s3 + $0x48] sm:$0xf]
    %v398 = vld [vmem:[%s3 + $0x4c] sm:$0xf]
    %v399 = vld [vmem:[%s3 + $0x50] sm:$0xf]
    %v400 = vld [vmem:[%s3 + $0x54] sm:$0xf]
    %v401 = vld [vmem:[%s3 + $0x58] sm:$0xf]
    %v402 = vld [vmem:[%s3 + $0x5c] sm:$0xf]
    %v403 = vld [vmem:[%s3 + $0x60] sm:$0xf]
    %v404 = vld [vmem:[%s3 + $0x64] sm:$0xf]
    %v405 = vld [vmem:[%s3 + $0x68] sm:$0xf]
    %v406 = vld [vmem:[%s3 + $0x6c] sm:$0xf]
    %v407 = vld [vmem:[%s3 + $0x70] sm:$0xf]
    %v408 = vld [vmem:[%s3 + $0x74] sm:$0xf]
    %v409 = vld [vmem:[%s3 + $0x78] sm:$0xf]
    %v410 = vld [vmem:[%s3 + $0x7c] sm:$0xf]
    %v411 = vld [vmem:[%s4] sm:$0x1]
    %v413 = vperm.slane %v411, 0
    %v447 = vunpack.c.l.b16 %v379
    %v448 = vunpack.c.l.b16 %v380
    %v449 = vunpack.c.l.b16 %v381
    %v450 = vunpack.c.l.b16 %v382
    %v451 = vunpack.c.l.b16 %v383
    %v452 = vunpack.c.l.b16 %v384
    %v453 = vunpack.c.l.b16 %v385
    %v454 = vunpack.c.l.b16 %v386
    %v455 = vunpack.c.l.b16 %v387
    %v456 = vunpack.c.l.b16 %v388
    %v457 = vunpack.c.l.b16 %v389
    %v458 = vunpack.c.l.b16 %v390
    %v459 = vunpack.c.l.b16 %v391
    %v460 = vunpack.c.l.b16 %v392
    %v461 = vunpack.c.l.b16 %v393
    %v462 = vunpack.c.l.b16 %v394
    %v463 = vunpack.c.l.b16 %v395
    %v464 = vunpack.c.l.b16 %v396
    %v465 = vunpack.c.l.b16 %v397
    %v466 = vunpack.c.l.b16 %v398
    %v467 = vunpack.c.l.b16 %v399
    %v468 = vunpack.c.l.b16 %v400
    %v469 = vunpack.c.l.b16 %v401
    %v470 = vunpack.c.l.b16 %v402
    %v471 = vunpack.c.l.b16 %v403
    %v472 = vunpack.c.l.b16 %v404
    %v473 = vunpack.c.l.b16 %v405
    %v474 = vunpack.c.l.b16 %v406
    %v475 = vunpack.c.l.b16 %v407
    %v476 = vunpack.c.l.b16 %v408
    %v477 = vunpack.c.l.b16 %v409
    %v478 = vunpack.c.l.b16 %v410
    %v479 = vpack.c.b16 %v448, %v447
    %v480 = vpack.c.b16 %v450, %v449
    %v481 = vpack.c.b16 %v452, %v451
    %v482 = vpack.c.b16 %v454, %v453
    %v483 = vpack.c.b16 %v456, %v455
    %v484 = vpack.c.b16 %v458, %v457
    %v485 = vpack.c.b16 %v460, %v459
    %v486 = vpack.c.b16 %v462, %v461
    %v487 = vpack.c.b16 %v464, %v463
    %v488 = vpack.c.b16 %v466, %v465
    %v489 = vpack.c.b16 %v468, %v467
    %v490 = vpack.c.b16 %v470, %v469
    %v491 = vpack.c.b16 %v472, %v471
    %v492 = vpack.c.b16 %v474, %v473
    %v493 = vpack.c.b16 %v476, %v475
    %v494 = vpack.c.b16 %v478, %v477
    %511 = vmatpush.bf16.msra.mxu0 %v486
    %512 = vmatpush.bf16.msra.mxu0 %v485
    %513 = vmatpush.bf16.msra.mxu0 %v484
    %514 = vmatpush.bf16.msra.mxu0 %v483
    %515 = vmatpush.bf16.msra.mxu0 %v482
    %516 = vmatpush.bf16.msra.mxu0 %v481
    %517 = vmatpush.bf16.msra.mxu0 %v480
    %518 = vmatpush.bf16.msra.mxu0 %v479
    %519 = vmatmul.bf16.gmra.mxu0 %v377
    %v520 = vpop.f32.mrf.mxu0
    %v521 = vadd.f32 %v413, %v520
    %v522 = vpop.f32.mrf.mxu0
    %v523 = vadd.f32 %v413, %v522
    %524 = vdwg.mxu0
    %525 = vmatpush.bf16.msra.mxu0 %v494
    %526 = vmatpush.bf16.msra.mxu0 %v493
    %527 = vmatpush.bf16.msra.mxu0 %v492
    %528 = vmatpush.bf16.msra.mxu0 %v491
    %529 = vmatpush.bf16.msra.mxu0 %v490
    %530 = vmatpush.bf16.msra.mxu0 %v489
    %531 = vmatpush.bf16.msra.mxu0 %v488
    %532 = vmatpush.bf16.msra.mxu0 %v487
    %533 = vmatmul.bf16.gmra.mxu0 %v378
    %v534 = vpop.f32.mrf.mxu0
    %v535 = vadd.f32 %v521, %v534
    %v536 = vpop.f32.mrf.mxu0
    %v537 = vadd.f32 %v523, %v536
    %538 = vdwg.mxu0
    %v539 = vmul.f32 %v535, 0.5
    %v540 = vmul.f32 %v537, 0.5
    %v541 = vmul.f32 %v535, 0.70710677
    %v542 = vmul.f32 %v537, 0.70710677
    %v543 = vmul.f32 %v541, %v541
    %v544 = vmin.f32 16.0, %v543
    %v545 = vmul.f32 %v544, 2.1237322e-06
    %v546 = vadd.f32 %v545, 0.00028619796
    %v547 = vmul.f32 %v544, %v546
    %v548 = vadd.f32 %v547, 0.0036580483
    %v549 = vmul.f32 %v544, %v548
    %v550 = vadd.f32 %v549, 0.05243302
    %v551 = vmul.f32 %v544, %v550
    %v552 = vadd.f32 %v551, 0.18741608
    %v553 = vmul.f32 %v544, %v552
    %v554 = vadd.f32 %v553, 1.1283791
    %v555 = vmul.f32 %v541, %v554
    %v556 = vmul.f32 %v544, 3.8918573e-05
    %v557 = vadd.f32 %v556, 0.001143296
    %v558 = vmul.f32 %v544, %v557
    %v559 = vadd.f32 %v558, 0.014752088
    %v560 = vmul.f32 %v544, %v559
    %v561 = vadd.f32 %v560, 0.112945676
    %v562 = vmul.f32 %v544, %v561
    %v563 = vadd.f32 %v562, 0.4994258
    %v564 = vmul.f32 %v544, %v563
    %v565 = vadd.f32 %v564, 1.0
    %v566 = vrcp.pop %v565
    %v567 = vmul.f32 %v565, %v566
    %v568 = vsub.f32 1.0, %v567
    %v569 = vmul.f32 %v566, %v568
    %v570 = vadd.f32 %v566, %v569
    %vm571 = vweird.f32 %v565
    %vm572 = vweird.f32 %v566
    %vm573 = vmor %vm571, %vm572
    %v574 = vsel %vm573, %v566, %v570
    %v575 = vand.u32 2147483647, %v565
    %vm576 = vcmp.eq.f32.partialorder %v575, 8.507059e+37
    %v577 = vand.u32 %v565, 2147483648
    %v578 = vor.u32 1.1754944e-38, %v577
    %v579 = vsel %vm576, %v578, %v574
    %v580 = vmul.f32 %v555, %v579
    %v581 = vmin.f32 %v580, 1.0
    %v582 = vmax.f32 %v581, -1.0
    %v583 = vmul.f32 %v542, %v542
    %v584 = vmin.f32 16.0, %v583
    %v585 = vmul.f32 %v584, 2.1237322e-06
    %v586 = vadd.f32 %v585, 0.00028619796
    %v587 = vmul.f32 %v584, %v586
    %v588 = vadd.f32 %v587, 0.0036580483
    %v589 = vmul.f32 %v584, %v588
    %v590 = vadd.f32 %v589, 0.05243302
    %v591 = vmul.f32 %v584, %v590
    %v592 = vadd.f32 %v591, 0.18741608
    %v593 = vmul.f32 %v584, %v592
    %v594 = vadd.f32 %v593, 1.1283791
    %v595 = vmul.f32 %v542, %v594
    %v596 = vmul.f32 %v584, 3.8918573e-05
    %v597 = vadd.f32 %v596, 0.001143296
    %v598 = vmul.f32 %v584, %v597
    %v599 = vadd.f32 %v598, 0.014752088
    %v600 = vmul.f32 %v584, %v599
    %v601 = vadd.f32 %v600, 0.112945676
    %v602 = vmul.f32 %v584, %v601
    %v603 = vadd.f32 %v602, 0.4994258
    %v604 = vmul.f32 %v584, %v603
    %v605 = vadd.f32 %v604, 1.0
    %v606 = vrcp.pop %v605
    %v607 = vmul.f32 %v605, %v606
    %v608 = vsub.f32 1.0, %v607
    %v609 = vmul.f32 %v606, %v608
    %v610 = vadd.f32 %v606, %v609
    %vm611 = vweird.f32 %v605
    %vm612 = vweird.f32 %v606
    %vm613 = vmor %vm611, %vm612
    %v614 = vsel %vm613, %v606, %v610
    %v615 = vand.u32 2147483647, %v605
    %vm616 = vcmp.eq.f32.partialorder %v615, 8.507059e+37
    %v617 = vand.u32 %v605, 2147483648
    %v618 = vor.u32 1.1754944e-38, %v617
    %v619 = vsel %vm616, %v618, %v614
    %v620 = vmul.f32 %v595, %v619
    %v621 = vmin.f32 %v620, 1.0
    %v622 = vmax.f32 %v621, -1.0
    %v623 = vadd.f32 %v582, 1.0
    %v624 = vadd.f32 %v622, 1.0
    %v625 = vmul.f32 %v539, %v623
    %v626 = vmul.f32 %v540, %v624
    %v627 = vadd.f32 %v625, %v21
    %v628 = vadd.f32 %v626, %v22
    %629 = vst [vmem:[#allocation2] sm:$0xff] %v627
    %630 = vst [vmem:[#allocation2 + $0x8] sm:$0xff] %v628
    // Predicated region
    $region22: #{mlp_forward.1} parent=1 // pred_check
      _
    $region23: #{mlp_forward.1} parent=1 // pred_check_branch
      %632 = sbr.rel (0) target = $region25
    $region24: #{mlp_forward.1} parent=1 // pred_region
      %634 = vsyncadd [#allocation3], 0
      %s635 = sshll.u32 [#allocation2], 4
      %s636 = int_to_ptr.vmem [resolvable:$true] %s635
      %s637 = sshll.u32 %s5, 4
      %s638 = int_to_ptr.hbm [resolvable:$true] %s637
      %643 = dma.vmem_to_hbm [thread:$0]  %s636, 256, %s638, [#allocation3], 128, 128, 8
    $region25: #{mlp_forward.1} parent=1 // pred_fallthru
      _
    // Predicated region
    $region26: #{mlp_forward.1} parent=1 // pred_check
      _
    $region27: #{mlp_forward.1} parent=1 // pred_check_branch
      %645 = sbr.rel (0) target = $region29
    $region28: #{mlp_forward.1} parent=1 // pred_region
      %647 = dma.done [#allocation3], 256
    $region29: #{mlp_forward.1} parent=1 // pred_fallthru
      _
    %648 = vsyncpa [#allocation3], 1

</llo_original>
